<compile_context>
chip_gen: v7x
topology: tpu7x:2x2x1
jax: 0.10.0
libtpu: 0.0.40
codegen_flags: <defaults>
</compile_context>

<pallas_src>
import functools

import jax
import jax.numpy as jnp
from jax import lax
from jax.experimental import pallas as pl
from jax.experimental.pallas import tpu as pltpu


def _round_up(x, m):
    return ((x + m - 1) // m) * m


def _sublane_multiple(dtype):
    itemsize = jnp.dtype(dtype).itemsize
    if itemsize >= 4:
        return 8
    if itemsize == 2:
        return 16
    return 32


def _vmem_config():
    """Per-generation (VMEM budget, vmem_limit_bytes, row-tile ladder)."""
    try:
        vmem_cap = int(pltpu.get_tpu_info().vmem_capacity_bytes)
    except Exception:
        vmem_cap = 64 * 1024 * 1024  # conservative (v7x-sized) fallback
    if vmem_cap >= 100 * 1024 * 1024:
        # v5e / v6e: 128 MiB physical VMEM -> bigger tiles, higher limit.
        return (80 * 1024 * 1024, 96 * 1024 * 1024,
                (4096, 2048, 1024, 512, 256, 128, 64, 32, 16, 8))
    # v7x: 64 MiB physical VMEM per TensorCore.
    return (40 * 1024 * 1024, 48 * 1024 * 1024,
            (2048, 1024, 512, 256, 128, 64, 32, 16, 8))


def _choose_row_tile(H, F, x_itemsize, w_itemsize, out_itemsize,
                     budget, ladder, align):
    """Largest row tile from the ladder that fits the VMEM budget."""
    # Per-row VMEM cost:
    #   double-buffered x tile                        2 * H * x_itemsize
    #   double-buffered output tile (OUT dtype!)      2 * H * out_itemsize
    #   f32 intermediate h, counted 2x (pre/post-GELU copies may not fuse)
    #   narrow copy of h for the second matmul (bf16 path)
    #   f32 y before downcast
    per_row = (2 * H * x_itemsize
               + 2 * H * out_itemsize
               + 2 * F * 4
               + (F * w_itemsize if w_itemsize < 4 else 0)
               + H * 4)
    # Grid-invariant weights / biases, conservatively counted double-buffered.
    weight_bytes = 2 * (2 * H * F * w_itemsize + (F + H) * 4)
    headroom = 4 * 1024 * 1024
    avail = max(budget - weight_bytes - headroom, align * per_row)
    max_rows = max(align, avail // per_row)
    tile = align
    for cand in ladder:
        if align <= cand <= max_rows:
            tile = cand
            break
    return tile


def _ffn_kernel(x_ref, win_ref, bin_ref, wout_ref, bout_ref, o_ref, *,
                approximate_gelu):
    x = x_ref[...]                                          # (tile, H)
    # Linear 1 on the MXU, f32 accumulation.
    h = jnp.dot(x, win_ref[...], preferred_element_type=jnp.float32)
    h = h + bin_ref[...]                                    # (1, F) f32 broadcast
    if approximate_gelu:
        # tanh GELU: one EUP tanh per element (otherwise-idle slot).
        c = 0.7978845608028654  # sqrt(2/pi)
        h = 0.5 * h * (1.0 + jnp.tanh(c * (h + 0.044715 * h * h * h)))
    else:
        # Exact erf GELU — matches torch.nn.GELU() default semantics.
        h = 0.5 * h * (1.0 + lax.erf(h * 0.7071067811865476))
    # Downcast the intermediate only when weights are narrower than f32.
    if wout_ref.dtype != jnp.float32:
        h = h.astype(wout_ref.dtype)
    # Linear 2 on the MXU, f32 accumulation.
    y = jnp.dot(h, wout_ref[...], preferred_element_type=jnp.float32)
    y = y + bout_ref[...]                                   # (1, H) f32 broadcast
    o_ref[...] = y.astype(o_ref.dtype)


def position_wise_feed_forward(h_V, w_in, b_in, w_out, b_out, *,
                               row_tile=None,
                               compute_dtype=jnp.bfloat16,
                               approximate_gelu=False):
    """ProteinMPNN PositionWiseFeedForward forward pass.

    h_V:   [B, L, H]   input activations
    w_in:  [F, H]      nn.Linear(H, F).weight (PyTorch layout)
    b_in:  [F]
    w_out: [H, F]      nn.Linear(F, H).weight
    b_out: [H]
    compute_dtype: operand dtype for x / W_in^T / W_out^T (default bf16 —
                   production path on v6e/v7x); None keeps the input dtype for
                   exact-f32 numerics.  Biases and accumulation are always f32.
    approximate_gelu: tanh-GELU (EUP) instead of exact erf; small (~1e-3)
                   numerics change, so off by default.
    """
    B, L, H = h_V.shape
    F = w_in.shape[0]
    N = B * L
    out_dtype = h_V.dtype

    x2d = h_V.reshape(N, H)
    win_t = w_in.T                   # (H, F)
    wout_t = w_out.T                 # (F, H)
    if compute_dtype is not None:
        compute_dtype = jnp.dtype(compute_dtype)
        if x2d.dtype != compute_dtype:
            x2d = x2d.astype(compute_dtype)
        win_t = win_t.astype(compute_dtype)
        wout_t = wout_t.astype(compute_dtype)
    bin2d = b_in.astype(jnp.float32).reshape(1, F)
    bout2d = b_out.astype(jnp.float32).reshape(1, H)

    x_itemsize = jnp.dtype(x2d.dtype).itemsize
    w_itemsize = jnp.dtype(win_t.dtype).itemsize
    out_itemsize = jnp.dtype(out_dtype).itemsize
    # Sublane alignment: 8 for f32, 16 when the compute dtype packs 2 rows/sublane.
    align = max(_sublane_multiple(x2d.dtype), _sublane_multiple(out_dtype))

    budget, vmem_limit, ladder = _vmem_config()

    if row_tile is None:
        row_tile = _choose_row_tile(H, F, x_itemsize, w_itemsize, out_itemsize,
                                    budget, ladder, align)
        # Keep >= 2 grid steps for medium/large N so both v7x TensorCores get
        # work via dimension_semantics=("parallel",).  No effect on v5e/v6e.
        if N >= 512:
            row_tile = min(row_tile, _round_up(pl.cdiv(N, 2), 256))
    row_tile = _round_up(max(int(row_tile), align), align)

    # Pad rows only to the sublane multiple (usually a no-op).  The ragged
    # last grid step is handled by Pallas edge masking — no pad-to-tile copy
    # of x and no out[:N] full-output copy on the common path.
    N_pad = _round_up(N, align)
    if N_pad != N:
        x2d = jnp.pad(x2d, ((0, N_pad - N), (0, 0)))
    row_tile = min(row_tile, N_pad)
    grid = (pl.cdiv(N_pad, row_tile),)

    cost = pl.CostEstimate(
        flops=4 * N * H * F + 10 * N * F,                   # two matmuls + GELU misc
        transcendentals=N * F,                              # erf/tanh per hidden elt
        bytes_accessed=(N * H * x_itemsize                  # x in
                        + N * H * out_itemsize              # y out
                        + 2 * H * F * w_itemsize            # both weight matrices
                        + (H + F) * 4),                     # biases
    )

    kernel = functools.partial(_ffn_kernel, approximate_gelu=approximate_gelu)

    out = pl.pallas_call(
        kernel,
        out_shape=jax.ShapeDtypeStruct((N_pad, H), out_dtype),
        grid_spec=pltpu.PrefetchScalarGridSpec(
            num_scalar_prefetch=0,
            grid=grid,
            in_specs=[
                pl.BlockSpec((row_tile, H), lambda i: (i, 0)),   # x rows
                pl.BlockSpec((H, F), lambda i: (0, 0)),          # W_in^T (grid-invariant)
                pl.BlockSpec((1, F), lambda i: (0, 0)),          # b_in (f32)
                pl.BlockSpec((F, H), lambda i: (0, 0)),          # W_out^T (grid-invariant)
                pl.BlockSpec((1, H), lambda i: (0, 0)),          # b_out (f32)
            ],
            out_specs=pl.BlockSpec((row_tile, H), lambda i: (i, 0)),
        ),
        compiler_params=pltpu.CompilerParams(
            dimension_semantics=("parallel",),
            vmem_limit_bytes=vmem_limit,
        ),
        cost_estimate=cost,
    )(x2d, win_t, bin2d, wout_t, bout2d)

    if N_pad != N:
        out = out[:N]
    return out.reshape(B, L, H)


def _reference(h_V, w_in, b_in, w_out, b_out):
    h = jnp.einsum("blh,fh->blf", h_V, w_in) + b_in
    h = jax.nn.gelu(h, approximate=False)
    return jnp.einsum("blf,hf->blh", h, w_out) + b_out


if __name__ == "__main__":
    num_hidden = 32
    num_ff = 64
    B, L = 2, 8

    key = jax.random.PRNGKey(0)
    k1, k2, k3, k4, k5 = jax.random.split(key, 5)
    h_V = jax.random.normal(k1, (B, L, num_hidden), dtype=jnp.float32)
    # Deterministic synthetic parameters (PyTorch nn.Linear shapes).
    w_in = jax.random.normal(k2, (num_ff, num_hidden), dtype=jnp.float32) * 0.1
    b_in = jax.random.normal(k3, (num_ff,), dtype=jnp.float32) * 0.1
    w_out = jax.random.normal(k4, (num_hidden, num_ff), dtype=jnp.float32) * 0.1
    b_out = jax.random.normal(k5, (num_hidden,), dtype=jnp.float32) * 0.1

    y_ref = _reference(h_V, w_in, b_in, w_out, b_out)

    # 1) Exact path (f32 operands, erf GELU): matches the PyTorch module tightly.
    y_f32 = position_wise_feed_forward(h_V, w_in, b_in, w_out, b_out,
                                       compute_dtype=None)
    y_f32 = jax.block_until_ready(y_f32)
    assert y_f32.shape == (B, L, num_hidden)
    assert jnp.allclose(y_f32, y_ref, atol=1e-5, rtol=1e-5), "f32 path mismatch"

    # 2) Production default (bf16 operands, f32 accumulation).  Looser
    #    tolerance is the expected bf16 rounding, not a bug.
    y_bf16 = position_wise_feed_forward(h_V, w_in, b_in, w_out, b_out)
    y_bf16 = jax.block_until_ready(y_bf16)
    assert jnp.allclose(y_bf16, y_ref, atol=3e-2, rtol=3e-2), "bf16 path mismatch"

    # 3) bf16 + tanh-GELU fast path (EUP); documented small numerics change.
    y_tanh = position_wise_feed_forward(h_V, w_in, b_in, w_out, b_out,
                                        approximate_gelu=True)
    y_tanh = jax.block_until_ready(y_tanh)
    assert jnp.allclose(y_tanh, y_ref, atol=3e-2, rtol=3e-2), "tanh path mismatch"

    print("KERNEL_OK")
</pallas_src>

<mosaic_0001>
module attributes {stable_mosaic.version = 11 : i64} {
  func.func @_ffn_kernel(%arg0: i32, %arg1: memref<16x32xf32, #tpu.memory_space<vmem>>, %arg2: memref<32x64xf32, #tpu.memory_space<vmem>>, %arg3: memref<1x64xf32, #tpu.memory_space<vmem>>, %arg4: memref<64x32xf32, #tpu.memory_space<vmem>>, %arg5: memref<1x32xf32, #tpu.memory_space<vmem>>, %arg6: memref<16x32xf32, #tpu.memory_space<vmem>>) attributes {dimension_semantics = [#tpu.dimension_semantics<parallel>], iteration_bounds = array<i64: 1>, scalar_prefetch = 0 : i64, scratch_operands = 0 : i64, tpu.core_type = #tpu.core_type<tc>, window_params = [{transform_indices = @transform_0, window_bounds = array<i64: 16, 32>}, {pipeline_mode = #tpu.pipeline_mode<synchronous>, transform_indices = @transform_1, window_bounds = array<i64: 32, 64>}, {pipeline_mode = #tpu.pipeline_mode<synchronous>, transform_indices = @transform_2, window_bounds = array<i64: 1, 64>}, {pipeline_mode = #tpu.pipeline_mode<synchronous>, transform_indices = @transform_3, window_bounds = array<i64: 64, 32>}, {pipeline_mode = #tpu.pipeline_mode<synchronous>, transform_indices = @transform_4, window_bounds = array<i64: 1, 32>}, {transform_indices = @transform_5, window_bounds = array<i64: 16, 32>}]} {
    %c0 = arith.constant 0 : index
    %c0_0 = arith.constant 0 : index
    %0 = vector.load %arg1[%c0, %c0_0] : memref<16x32xf32, #tpu.memory_space<vmem>>, vector<16x32xf32>
    %c0_1 = arith.constant 0 : index
    %c0_2 = arith.constant 0 : index
    %1 = vector.load %arg2[%c0_1, %c0_2] : memref<32x64xf32, #tpu.memory_space<vmem>>, vector<32x64xf32>
    %cst = arith.constant dense<0.000000e+00> : vector<16x64xf32>
    %2 = tpu.matmul %0, %1, %cst {dimension_numbers = #tpu.dot_dimension_numbers<[1], [0], [0], [1], [0, 0, 1, 1], [], []>} : vector<16x32xf32>, vector<32x64xf32>, vector<16x64xf32> -> vector<16x64xf32>
    %c0_3 = arith.constant 0 : index
    %c0_4 = arith.constant 0 : index
    %3 = vector.load %arg3[%c0_3, %c0_4] : memref<1x64xf32, #tpu.memory_space<vmem>>, vector<1x64xf32>
    %4 = vector.broadcast %3 : vector<1x64xf32> to vector<16x64xf32>
    %5 = arith.addf %2, %4 : vector<16x64xf32>
    %cst_5 = arith.constant 5.000000e-01 : f32
    %6 = vector.broadcast %cst_5 : f32 to vector<16x64xf32>
    %7 = arith.mulf %6, %5 : vector<16x64xf32>
    %cst_6 = arith.constant 0.707106769 : f32
    %8 = vector.broadcast %cst_6 : f32 to vector<16x64xf32>
    %9 = arith.mulf %5, %8 : vector<16x64xf32>
    %10 = math.erf %9 : vector<16x64xf32>
    %cst_7 = arith.constant 1.000000e+00 : f32
    %11 = vector.broadcast %cst_7 : f32 to vector<16x64xf32>
    %12 = arith.addf %11, %10 : vector<16x64xf32>
    %13 = arith.mulf %7, %12 : vector<16x64xf32>
    %c0_8 = arith.constant 0 : index
    %c0_9 = arith.constant 0 : index
    %14 = vector.load %arg4[%c0_8, %c0_9] : memref<64x32xf32, #tpu.memory_space<vmem>>, vector<64x32xf32>
    %cst_10 = arith.constant dense<0.000000e+00> : vector<16x32xf32>
    %15 = tpu.matmul %13, %14, %cst_10 {dimension_numbers = #tpu.dot_dimension_numbers<[1], [0], [0], [1], [0, 0, 1, 1], [], []>} : vector<16x64xf32>, vector<64x32xf32>, vector<16x32xf32> -> vector<16x32xf32>
    %c0_11 = arith.constant 0 : index
    %c0_12 = arith.constant 0 : index
    %16 = vector.load %arg5[%c0_11, %c0_12] : memref<1x32xf32, #tpu.memory_space<vmem>>, vector<1x32xf32>
    %17 = vector.broadcast %16 : vector<1x32xf32> to vector<16x32xf32>
    %18 = arith.addf %15, %17 : vector<16x32xf32>
    %c0_13 = arith.constant 0 : index
    %c0_14 = arith.constant 0 : index
    %19 = vector.load %arg6[%c0_13, %c0_14] : memref<16x32xf32, #tpu.memory_space<vmem>>, vector<16x32xf32>
    tpu.vector_store %arg6[%c0_13, %c0_14], %18 {strides = array<i32>} : memref<16x32xf32, #tpu.memory_space<vmem>>, vector<16x32xf32>,
    return
  }
  func.func @transform_0(%arg0: i32) -> (i32, i32) {
    %c0_i32 = arith.constant 0 : i32
    %c0_i32_0 = arith.constant 0 : i32
    return %arg0, %c0_i32 : i32, i32
  }
  func.func @transform_1(%arg0: i32) -> (i32, i32) {
    %c0_i32 = arith.constant 0 : i32
    %c0_i32_0 = arith.constant 0 : i32
    %c0_i32_1 = arith.constant 0 : i32
    return %c0_i32, %c0_i32_0 : i32, i32
  }
  func.func @transform_2(%arg0: i32) -> (i32, i32) {
    %c0_i32 = arith.constant 0 : i32
    %c0_i32_0 = arith.constant 0 : i32
    %c0_i32_1 = arith.constant 0 : i32
    return %c0_i32, %c0_i32_0 : i32, i32
  }
  func.func @transform_3(%arg0: i32) -> (i32, i32) {
    %c0_i32 = arith.constant 0 : i32
    %c0_i32_0 = arith.constant 0 : i32
    %c0_i32_1 = arith.constant 0 : i32
    return %c0_i32, %c0_i32_0 : i32, i32
  }
  func.func @transform_4(%arg0: i32) -> (i32, i32) {
    %c0_i32 = arith.constant 0 : i32
    %c0_i32_0 = arith.constant 0 : i32
    %c0_i32_1 = arith.constant 0 : i32
    return %c0_i32, %c0_i32_0 : i32, i32
  }
  func.func @transform_5(%arg0: i32) -> (i32, i32) {
    %c0_i32 = arith.constant 0 : i32
    %c0_i32_0 = arith.constant 0 : i32
    return %arg0, %c0_i32 : i32, i32
  }
}

</mosaic_0001>

<llo_original>
// kernel: tpu_custom_call.1
$region0: #{tpu_custom_call.1}
  #allocation0 [shape = 'u32[]', space=smem, size = 0x4, offset = 0x4, fixed_abs, tag = 'smem constant byte address 0x4 - core index']
  #allocation1 [shape = 'u32[144,128]{1,0:T(1,128)}', space=vmem, size = 0x12000, scoped, tag = 'internal scratch']
  %s0 = inlined_call_operand.vmem [shape: f32[16,32], index: 0, kind: input, shape index: {}]
  %s1 = inlined_call_operand.vmem [shape: f32[32,64], index: 1, kind: input, shape index: {}]
  %s2 = inlined_call_operand.vmem [shape: f32[1,64], index: 2, kind: input, shape index: {}]
  %s3 = inlined_call_operand.vmem [shape: f32[64,32], index: 3, kind: input, shape index: {}]
  %s4 = inlined_call_operand.vmem [shape: f32[1,32], index: 4, kind: input, shape index: {}]
  %s5 = inlined_call_operand.hbm [shape: f32[16,32], index: 5, kind: output, shape index: {}]
  %s6 = sld [smem:[#allocation0]]
  $region30: #{tpu_custom_call.1} parent=0
    _
  %s8 = ssub.s32 1, %s6
  %s9 = scalar_select 0, %s8, %s6
  $region1: #{tpu_custom_call.1} parent=0
    #allocation2 [shape = 'u8[8192]{0}', space=vmem, size = 0x2000, scoped, tag = 'output window, operand 0, single buffered']
    #allocation3 [shape = 's32[1]{0}', space=sflag, size = 0x4, scoped, tag = 'scoped memory for tpu_custom_call.1']
    %10 = vsyncpa [#allocation3], 0
    // Predicated region
    $region2: #{tpu_custom_call.1} parent=1 // pred_check
      _
    $region3: #{tpu_custom_call.1} parent=1 // pred_check_branch
      %12 = sbr.rel (0) target = $region5
    $region4: #{tpu_custom_call.1} parent=1 // pred_region
      _
    $region5: #{tpu_custom_call.1} parent=1 // pred_fallthru
      _
    // Predicated region
    $region6: #{tpu_custom_call.1} parent=1 // pred_check
      _
    $region7: #{tpu_custom_call.1} parent=1 // pred_check_branch
      %14 = sbr.rel (0) target = $region9
    $region8: #{tpu_custom_call.1} parent=1 // pred_region
      _
    $region9: #{tpu_custom_call.1} parent=1 // pred_fallthru
      _
    // Predicated region
    $region10: #{tpu_custom_call.1} parent=1 // pred_check
      _
    $region11: #{tpu_custom_call.1} parent=1 // pred_check_branch
      %16 = sbr.rel (0) target = $region13
    $region12: #{tpu_custom_call.1} parent=1 // pred_region
      _
    $region13: #{tpu_custom_call.1} parent=1 // pred_fallthru
      _
    // Predicated region
    $region14: #{tpu_custom_call.1} parent=1 // pred_check
      _
    $region15: #{tpu_custom_call.1} parent=1 // pred_check_branch
      %18 = sbr.rel (0) target = $region17
    $region16: #{tpu_custom_call.1} parent=1 // pred_region
      _
    $region17: #{tpu_custom_call.1} parent=1 // pred_fallthru
      _
    // Predicated region
    $region18: #{tpu_custom_call.1} parent=1 // pred_check
      _
    $region19: #{tpu_custom_call.1} parent=1 // pred_check_branch
      %20 = sbr.rel (0) target = $region21
    $region20: #{tpu_custom_call.1} parent=1 // pred_region
      _
    $region21: #{tpu_custom_call.1} parent=1 // pred_fallthru
      _
    %v21 = vld [vmem:[%s0] sm:$0xff]
    %v22 = vld [vmem:[%s0 + $0x8] sm:$0xff]
    %v23 = vld [vmem:[%s1] sm:$0xff]
    %v24 = vld [vmem:[%s1 + $0x8] sm:$0xff]
    %v25 = vld [vmem:[%s1 + $0x10] sm:$0xff]
    %v26 = vld [vmem:[%s1 + $0x18] sm:$0xff]
    %v27 = vld [vmem:[%s2] sm:$0x1]
    %v29 = vlaneseq
    %v30 = vshrl.u32 %v29, 7
    %v31 = vsub.s32 0, %v30
    %v32 = vrot.slane %v27, %v31
    %vm34 = vcmask 261120
    %v36 = vsel %vm34, %v21, 0
    %v39 = vsel %vm34, %v22, 0
    %41 = vmatprep.subr.mxu0 0.0
    %42 = vmatpush1.msra.mxu0 %v23
    %43 = vmatprep.subr.mxu0 0.0
    %44 = vmatpush1.msra.mxu0 %v24
    %45 = vmatprep.subr.mxu0 0.0
    %46 = vmatpush1.msra.mxu0 %v25
    %47 = vmatprep.subr.mxu0 0.0
    %48 = vmatpush1.msra.mxu0 %v26
    %49 = vmatprep.subr.mxu0 0.0
    %50 = vmatpush1.msra.mxu0 0.0
    %51 = vmatprep.subr.mxu0 0.0
    %52 = vmatpush1.msra.mxu0 0.0
    %53 = vmatprep.subr.mxu0 0.0
    %54 = vmatpush1.msra.mxu0 0.0
    %55 = vmatprep.subr.mxu0 0.0
    %56 = vmatpush1.msra.mxu0 0.0
    %57 = vmatprep.subr.mxu0 0.0
    %58 = vmatpush1.msra.mxu0 0.0
    %59 = vmatprep.subr.mxu0 0.0
    %60 = vmatpush1.msra.mxu0 0.0
    %61 = vmatprep.subr.mxu0 0.0
    %62 = vmatpush1.msra.mxu0 0.0
    %63 = vmatprep.subr.mxu0 0.0
    %64 = vmatpush1.msra.mxu0 0.0
    %65 = vmatprep.subr.mxu0 0.0
    %66 = vmatpush1.msra.mxu0 0.0
    %67 = vmatprep.subr.mxu0 0.0
    %68 = vmatpush1.msra.mxu0 0.0
    %69 = vmatprep.subr.mxu0 0.0
    %70 = vmatpush1.msra.mxu0 0.0
    %71 = vmatprep.subr.mxu0 0.0
    %72 = vmatpush1.msra.mxu0 0.0
    %73 = vmatprep.subr.mxu0 0.0
    %74 = vmatpush1.msra.mxu0 0.0
    %75 = vmatprep.subr.mxu0 0.0
    %76 = vmatpush1.msra.mxu0 0.0
    %77 = vmatprep.subr.mxu0 0.0
    %78 = vmatpush1.msra.mxu0 0.0
    %79 = vmatprep.subr.mxu0 0.0
    %80 = vmatpush1.msra.mxu0 0.0
    %81 = vmatprep.subr.mxu0 0.0
    %82 = vmatpush1.msra.mxu0 0.0
    %83 = vmatprep.subr.mxu0 0.0
    %84 = vmatpush1.msra.mxu0 0.0
    %85 = vmatprep.subr.mxu0 0.0
    %86 = vmatpush1.msra.mxu0 0.0
    %87 = vmatprep.subr.mxu0 0.0
    %88 = vmatpush1.msra.mxu0 0.0
    %89 = vmatprep.subr.mxu0 0.0
    %90 = vmatpush1.msra.mxu0 0.0
    %91 = vmatprep.subr.mxu0 0.0
    %92 = vmatpush1.msra.mxu0 0.0
    %93 = vmatprep.subr.mxu0 0.0
    %94 = vmatpush1.msra.mxu0 0.0
    %95 = vmatprep.subr.mxu0 0.0
    %96 = vmatpush1.msra.mxu0 0.0
    %97 = vmatprep.subr.mxu0 0.0
    %98 = vmatpush1.msra.mxu0 0.0
    %99 = vmatprep.subr.mxu0 0.0
    %100 = vmatpush1.msra.mxu0 0.0
    %101 = vmatprep.subr.mxu0 0.0
    %102 = vmatpush1.msra.mxu0 0.0
    %103 = vmatprep.subr.mxu0 0.0
    %104 = vmatpush1.msra.mxu0 0.0
    %105 = vmatprep.mubr.f32.mxu0 0.0
    %106 = vmatmul.mubr.f32.gmra.mrb[0].mxu0 %v36
    %v107 = vpop.f32.mrb[0].mxu0
    %v108 = vadd.f32 %v32, %v107
    %v109 = vpop.f32.mrb[0].mxu0
    %110 = vmatprep.mubr.f32.mxu0 0.0
    %111 = vmatmul.mubr.f32.gmra.mrb[0].mxu0 %v39
    %v112 = vpop.f32.mrb[0].mxu0
    %v113 = vadd.f32 %v32, %v112
    %v114 = vpop.f32.mrb[0].mxu0
    %115 = vdwg.mxu0
    %v116 = vmul.f32 %v108, 0.5
    %v117 = vmul.f32 %v113, 0.5
    %v118 = vmul.f32 %v108, 0.70710677
    %v119 = vmul.f32 %v113, 0.70710677
    %v120 = verf.f32.pop %v118
    %v121 = verf.f32.pop %v119
    %v122 = vadd.f32 %v120, 1.0
    %v123 = vadd.f32 %v121, 1.0
    %v124 = vmul.f32 %v116, %v122
    %v125 = vmul.f32 %v117, %v123
    %v126 = vld [vmem:[%s3] sm:$0xff]
    %v127 = vld [vmem:[%s3 + $0x8] sm:$0xff]
    %v128 = vld [vmem:[%s3 + $0x10] sm:$0xff]
    %v129 = vld [vmem:[%s3 + $0x18] sm:$0xff]
    %v130 = vld [vmem:[%s3 + $0x20] sm:$0xff]
    %v131 = vld [vmem:[%s3 + $0x28] sm:$0xff]
    %v132 = vld [vmem:[%s3 + $0x30] sm:$0xff]
    %v133 = vld [vmem:[%s3 + $0x38] sm:$0xff]
    %v134 = vld [vmem:[%s4] sm:$0x1]
    %v136 = vlaneseq
    %v137 = vshrl.u32 %v136, 7
    %v138 = vsub.s32 0, %v137
    %v139 = vrot.slane %v134, %v138
    %vm141 = vcmask 523264
    %v143 = vsel %vm141, %v124, 0
    %v146 = vsel %vm141, %v125, 0
    %148 = vmatprep.subr.mxu0 0.0
    %149 = vmatpush1.msra.mxu0 %v126
    %150 = vmatprep.subr.mxu0 0.0
    %151 = vmatpush1.msra.mxu0 %v127
    %152 = vmatprep.subr.mxu0 0.0
    %153 = vmatpush1.msra.mxu0 %v128
    %154 = vmatprep.subr.mxu0 0.0
    %155 = vmatpush1.msra.mxu0 %v129
    %156 = vmatprep.subr.mxu0 0.0
    %157 = vmatpush1.msra.mxu0 %v130
    %158 = vmatprep.subr.mxu0 0.0
    %159 = vmatpush1.msra.mxu0 %v131
    %160 = vmatprep.subr.mxu0 0.0
    %161 = vmatpush1.msra.mxu0 %v132
    %162 = vmatprep.subr.mxu0 0.0
    %163 = vmatpush1.msra.mxu0 %v133
    %164 = vmatprep.subr.mxu0 0.0
    %165 = vmatpush1.msra.mxu0 0.0
    %166 = vmatprep.subr.mxu0 0.0
    %167 = vmatpush1.msra.mxu0 0.0
    %168 = vmatprep.subr.mxu0 0.0
    %169 = vmatpush1.msra.mxu0 0.0
    %170 = vmatprep.subr.mxu0 0.0
    %171 = vmatpush1.msra.mxu0 0.0
    %172 = vmatprep.subr.mxu0 0.0
    %173 = vmatpush1.msra.mxu0 0.0
    %174 = vmatprep.subr.mxu0 0.0
    %175 = vmatpush1.msra.mxu0 0.0
    %176 = vmatprep.subr.mxu0 0.0
    %177 = vmatpush1.msra.mxu0 0.0
    %178 = vmatprep.subr.mxu0 0.0
    %179 = vmatpush1.msra.mxu0 0.0
    %180 = vmatprep.subr.mxu0 0.0
    %181 = vmatpush1.msra.mxu0 0.0
    %182 = vmatprep.subr.mxu0 0.0
    %183 = vmatpush1.msra.mxu0 0.0
    %184 = vmatprep.subr.mxu0 0.0
    %185 = vmatpush1.msra.mxu0 0.0
    %186 = vmatprep.subr.mxu0 0.0
    %187 = vmatpush1.msra.mxu0 0.0
    %188 = vmatprep.subr.mxu0 0.0
    %189 = vmatpush1.msra.mxu0 0.0
    %190 = vmatprep.subr.mxu0 0.0
    %191 = vmatpush1.msra.mxu0 0.0
    %192 = vmatprep.subr.mxu0 0.0
    %193 = vmatpush1.msra.mxu0 0.0
    %194 = vmatprep.subr.mxu0 0.0
    %195 = vmatpush1.msra.mxu0 0.0
    %196 = vmatprep.subr.mxu0 0.0
    %197 = vmatpush1.msra.mxu0 0.0
    %198 = vmatprep.subr.mxu0 0.0
    %199 = vmatpush1.msra.mxu0 0.0
    %200 = vmatprep.subr.mxu0 0.0
    %201 = vmatpush1.msra.mxu0 0.0
    %202 = vmatprep.subr.mxu0 0.0
    %203 = vmatpush1.msra.mxu0 0.0
    %204 = vmatprep.subr.mxu0 0.0
    %205 = vmatpush1.msra.mxu0 0.0
    %206 = vmatprep.subr.mxu0 0.0
    %207 = vmatpush1.msra.mxu0 0.0
    %208 = vmatprep.subr.mxu0 0.0
    %209 = vmatpush1.msra.mxu0 0.0
    %210 = vmatprep.subr.mxu0 0.0
    %211 = vmatpush1.msra.mxu0 0.0
    %212 = vmatprep.mubr.f32.mxu0 0.0
    %213 = vmatmul.mubr.f32.gmra.mrb[0].mxu0 %v143
    %v214 = vpop.f32.mrb[0].mxu0
    %v215 = vadd.f32 %v139, %v214
    %v216 = vpop.f32.mrb[0].mxu0
    %217 = vmatprep.mubr.f32.mxu0 0.0
    %218 = vmatmul.mubr.f32.gmra.mrb[0].mxu0 %v146
    %v219 = vpop.f32.mrb[0].mxu0
    %v220 = vadd.f32 %v139, %v219
    %v221 = vpop.f32.mrb[0].mxu0
    %222 = vdwg.mxu0
    %223 = vst.msk [vmem:[#allocation2] sm:$0xff] %vm34, %v215
    %224 = vst.msk [vmem:[#allocation2 + $0x8] sm:$0xff] %vm34, %v220
    // Predicated region
    $region22: #{tpu_custom_call.1} parent=1 // pred_check
      _
    $region23: #{tpu_custom_call.1} parent=1 // pred_check_branch
      %226 = sbr.rel (0) target = $region25
    $region24: #{tpu_custom_call.1} parent=1 // pred_region
      %s228 = ssub.s32 256, 256
      %229 = vsyncadd [#allocation3], %s228
      %s230 = sshll.u32 [#allocation2], 4
      %s231 = int_to_ptr.vmem [resolvable:$true] %s230
      %236 = dma.vmem_to_hbm [thread:$0]  %s231, 256, %s5, [#allocation3], 128, 128, 8
    $region25: #{tpu_custom_call.1} parent=1 // pred_fallthru
      _
    // Predicated region
    $region26: #{tpu_custom_call.1} parent=1 // pred_check
      _
    $region27: #{tpu_custom_call.1} parent=1 // pred_check_branch
      %238 = sbr.rel (0) target = $region29
    $region28: #{tpu_custom_call.1} parent=1 // pred_region
      %239 = dma.done [#allocation3], 256
    $region29: #{tpu_custom_call.1} parent=1 // pred_fallthru
      _
    %240 = vsyncpa [#allocation3], 1

</llo_original>
